<compile_context>
chip_gen: v7x
topology: tpu7x:2x2x1
jax: 0.10.0
libtpu: 0.0.40
codegen_flags: <defaults>
</compile_context>

<pallas_src>
import functools
import math

import jax
import jax.numpy as jnp
from jax import lax
from jax.experimental import pallas as pl
from jax.experimental.pallas import tpu as pltpu


def _round_up(x, m):
    return ((x + m - 1) // m) * m


def _vmem_budget_bytes():
    cap = 64 << 20  # conservative per-core default (v7x) if the query fails
    try:
        cap = int(pltpu.get_tpu_info().vmem_capacity_bytes)
    except Exception:
        pass
    # ~3/4 of per-core VMEM: ~48 MiB on 64 MiB v7x, ~96 MiB on 128 MiB v5e/v6e.
    return max(32 << 20, min((cap * 3) // 4, 112 << 20))


def _select_tiling(n_mc, bs, d, h, budget_bytes):
    """Pick (tile_h, h_pad, tile_d, d_pad, group, mc_pad)."""
    # Lane-dense H tile: largest of {512,384,256,128} whose round-up padding stays
    # within 25% of H (don't collapse to 128 just because H % 512 != 0).
    h128 = _round_up(h, 128)
    tile_h = 128
    for cand in (512, 384, 256, 128):
        if _round_up(h128, cand) - h128 <= h128 // 4:
            tile_h = cand
            break
    h_pad = _round_up(h128, tile_h)

    # K (=D) tiling only when a full-D weight tile would be big (bounds VMEM on v7x).
    if d * tile_h * 4 <= (4 << 20):
        tile_d, d_pad = d, d
    else:
        tile_d = 512
        d_pad = _round_up(d, tile_d)

    n_h_blocks = h_pad // tile_h

    # MC group: biggest g (<= 8) whose working set fits the budget; keep >= 2 grid
    # steps on a parallel axis so both v7x TensorCores receive work.
    cap = 8
    if n_h_blocks == 1 and n_mc > 1:
        cap = min(cap, -(-n_mc // 2))  # ceil(n_mc / 2)

    def work(g):
        unroll = min(g, 4)
        return 4 * (2 * g * bs * tile_d            # x block (double-buffered)
                    + 2 * 2 * tile_d * tile_h      # w_loc + w_scale (double-buffered)
                    + 2 * g * tile_d * tile_h      # eps_w block (double-buffered)
                    + 2 * g * bs * tile_h          # out block (double-buffered)
                    + 2 * g * tile_h               # sampled bias (double-buffered)
                    + unroll * tile_d * tile_h)    # in-kernel sampled-w temporaries

    group = 1
    for g in range(max(1, min(n_mc, cap)), 0, -1):
        if work(g) <= budget_bytes:
            group = g
            break
    mc_pad = _round_up(n_mc, group)
    return tile_h, h_pad, tile_d, d_pad, group, mc_pad


def _bayes_linear_kernel(x_ref, wloc_ref, wscale_ref, epsw_ref, b_ref, o_ref,
                         *, group, unroll, mxu_dtype):
    k = pl.program_id(2)

    @pl.when(k == 0)
    def _():
        o_ref[...] = jnp.zeros_like(o_ref)

    # MC-invariant weight statistics for this (D, H) tile. With the MC axis inner to
    # the H axis their block index is unchanged across steps -> DMA is skipped.
    wloc = wloc_ref[...]        # [TD, TH] f32
    wscale = wscale_ref[...]    # [TD, TH] f32

    def body(g, carry):
        # Reparameterized weight sample for draw g (softplus already applied outside).
        w = wloc + epsw_ref[g].astype(jnp.float32) * wscale              # [TD, TH] f32
        if mxu_dtype is not None:
            w = w.astype(mxu_dtype)
        o_ref[g] += jnp.dot(x_ref[g], w,
                            preferred_element_type=jnp.float32).astype(o_ref.dtype)
        return carry

    lax.fori_loop(0, group, body, 0, unroll=unroll)

    @pl.when(k == pl.num_programs(2) - 1)
    def _():
        o_ref[...] = o_ref[...] + b_ref[...].astype(o_ref.dtype)


def bayes_flatten_linear_forward(x, params, eps_w, eps_b, *, compute_dtype=None):
    """x: [N_MC, B, ...spatial...] -> out: [N_MC, B, num_hidden]."""
    n_mc, bs = x.shape[0], x.shape[1]
    x_flat = x.reshape(n_mc, bs, -1)                     # flatten(2, -1)
    d = x_flat.shape[-1]

    w_loc, w_logscale, b_loc, b_logscale = params
    h = w_loc.shape[-1]
    assert w_loc.shape == (d, h)

    # --- MC-invariant / tiny elementwise work hoisted out of the kernel ---
    w_scale = jax.nn.softplus(w_logscale)                                        # [D, H]
    sampled_b = b_loc[None, :] + eps_b * jax.nn.softplus(b_logscale)[None, :]    # [N_MC, H]

    budget = _vmem_budget_bytes()
    tile_h, h_pad, tile_d, d_pad, group, mc_pad = _select_tiling(n_mc, bs, d, h, budget)

    # Optional reduced-precision streaming for the dominant HBM reads (eps_w, x).
    stream_dtype = x_flat.dtype if compute_dtype is None else compute_dtype

    def pad3(a, s0, s1, s2):
        pads = ((0, s0 - a.shape[0]), (0, s1 - a.shape[1]), (0, s2 - a.shape[2]))
        return a if all(p == (0, 0) for p in pads) else jnp.pad(a, pads)

    def pad2(a, s0, s1):
        pads = ((0, s0 - a.shape[0]), (0, s1 - a.shape[1]))
        return a if all(p == (0, 0) for p in pads) else jnp.pad(a, pads)

    x_p = pad3(x_flat, mc_pad, bs, d_pad).astype(stream_dtype)
    eps_p = pad3(eps_w, mc_pad, d_pad, h_pad).astype(stream_dtype)
    wloc_p = pad2(w_loc, d_pad, h_pad)
    wscale_p = pad2(w_scale, d_pad, h_pad)
    b_p = pad2(sampled_b, mc_pad, h_pad).reshape(mc_pad, 1, h_pad)

    n_h_blocks = h_pad // tile_h
    n_mc_blocks = mc_pad // group
    n_d_blocks = d_pad // tile_d

    kernel = functools.partial(
        _bayes_linear_kernel,
        group=group,
        unroll=min(group, 4),
        mxu_dtype=(None if compute_dtype is None else compute_dtype),
    )

    out_pad = pl.pallas_call(
        kernel,
        out_shape=jax.ShapeDtypeStruct((mc_pad, bs, h_pad), jnp.float32),
        grid_spec=pltpu.PrefetchScalarGridSpec(
            num_scalar_prefetch=0,
            # H outermost, MC in the middle, D (reduction) innermost.
            grid=(n_h_blocks, n_mc_blocks, n_d_blocks),
            in_specs=[
                pl.BlockSpec((group, bs, tile_d), lambda j, m, k: (m, 0, k)),      # x
                pl.BlockSpec((tile_d, tile_h), lambda j, m, k: (k, j)),            # w_loc
                pl.BlockSpec((tile_d, tile_h), lambda j, m, k: (k, j)),            # softplus(w_logscale)
                pl.BlockSpec((group, tile_d, tile_h), lambda j, m, k: (m, k, j)),  # eps_w
                pl.BlockSpec((group, 1, tile_h), lambda j, m, k: (m, 0, j)),       # sampled bias
            ],
            out_specs=pl.BlockSpec((group, bs, tile_h), lambda j, m, k: (m, 0, j)),
        ),
        compiler_params=pltpu.CompilerParams(
            dimension_semantics=("parallel", "parallel", "arbitrary"),
            vmem_limit_bytes=int(budget),
        ),
    )(x_p, wloc_p, wscale_p, eps_p, b_p)

    out = out_pad
    if mc_pad != n_mc or h_pad != h:
        out = out[:n_mc, :, :h]
    return out.astype(x.dtype)


def init_bayes_linear_params(key, in_features, out_features):
    """Deterministic init mirroring BayesLinear.__init__ / reset_parameters."""
    k_w, k_b = jax.random.split(key)
    mu_init_std = math.sqrt(2.0 / (in_features + out_features))

    # kaiming_uniform_(a=sqrt(5)) on a [in, out] tensor: fan_in = size(1) = out_features
    fan_in = out_features
    w_bound = 1.0 / math.sqrt(fan_in)
    w_loc = jax.random.uniform(k_w, (in_features, out_features),
                               minval=-w_bound, maxval=w_bound, dtype=jnp.float32)
    w_logscale = jnp.full((in_features, out_features),
                          math.log(math.expm1(mu_init_std / out_features)),
                          dtype=jnp.float32)

    b_bound = 1.0 / math.sqrt(fan_in)
    b_loc = jax.random.uniform(k_b, (out_features,),
                               minval=-b_bound, maxval=b_bound, dtype=jnp.float32)
    b_logscale = jnp.full((out_features,),
                          math.log(math.expm1(mu_init_std)),
                          dtype=jnp.float32)
    return (w_loc, w_logscale, b_loc, b_logscale)


def reference_forward(x, params, eps_w, eps_b):
    n_mc, bs = x.shape[0], x.shape[1]
    x_flat = x.reshape(n_mc, bs, -1)
    w_loc, w_logscale, b_loc, b_logscale = params
    sampled_w = w_loc[None] + eps_w * jax.nn.softplus(w_logscale)[None]
    sampled_b = b_loc[None] + eps_b * jax.nn.softplus(b_logscale)[None]
    return jnp.einsum("mbd,mdh->mbh", x_flat, sampled_w) + sampled_b[:, None, :]


if __name__ == "__main__":
    key = jax.random.PRNGKey(0)
    k_x, k_init, k_ew, k_eb = jax.random.split(key, 4)

    # x: [N_MC, Batch, C, H, W] -> flatten(2,-1) gives D = 4*4*4 = 64
    n_mc, bs, c, hh, ww = 4, 8, 4, 4, 4
    num_hidden = 32
    d = c * hh * ww

    x = jax.random.normal(k_x, (n_mc, bs, c, hh, ww), dtype=jnp.float32)

    # BayesLinear(D, num_hidden) parameters (adaptive init happens on first forward)
    params = init_bayes_linear_params(k_init, d, num_hidden)

    # Reparameterization noise for weights / bias (one sample per MC draw)
    eps_w = jax.random.normal(k_ew, (n_mc, d, num_hidden), dtype=jnp.float32)
    eps_b = jax.random.normal(k_eb, (n_mc, num_hidden), dtype=jnp.float32)

    out = bayes_flatten_linear_forward(x, params, eps_w, eps_b)
    out = jax.block_until_ready(out)

    ref = reference_forward(x, params, eps_w, eps_b)
    assert out.shape == (n_mc, bs, num_hidden)
    assert jnp.allclose(out, ref, atol=1e-5, rtol=1e-5)

    # TODO(synk): kl_div / entropy training diagnostics are not computed (not part
    # of the returned forward tensor); bf16 streaming / in-kernel PRNG for eps_w are
    # available only behind compute_dtype (default keeps the module's f32 numerics).
    print("KERNEL_OK")
</pallas_src>

<mosaic_0001>
module attributes {stable_mosaic.version = 11 : i64} {
  func.func @_bayes_linear_kernel(%arg0: i32, %arg1: i32, %arg2: i32, %arg3: memref<2x8x64xf32, #tpu.memory_space<vmem>>, %arg4: memref<64x128xf32, #tpu.memory_space<vmem>>, %arg5: memref<64x128xf32, #tpu.memory_space<vmem>>, %arg6: memref<2x64x128xf32, #tpu.memory_space<vmem>>, %arg7: memref<2x1x128xf32, #tpu.memory_space<vmem>>, %arg8: memref<2x8x128xf32, #tpu.memory_space<vmem>>) attributes {dimension_semantics = [#tpu.dimension_semantics<parallel>, #tpu.dimension_semantics<parallel>, #tpu.dimension_semantics<arbitrary>], iteration_bounds = array<i64: 1, 2, 1>, scalar_prefetch = 0 : i64, scratch_operands = 0 : i64, tpu.core_type = #tpu.core_type<tc>, window_params = [{transform_indices = @transform_0, window_bounds = array<i64: 2, 8, 64>}, {transform_indices = @transform_1, window_bounds = array<i64: 64, 128>}, {transform_indices = @transform_2, window_bounds = array<i64: 64, 128>}, {transform_indices = @transform_3, window_bounds = array<i64: 2, 64, 128>}, {transform_indices = @transform_4, window_bounds = array<i64: 2, 1, 128>}, {transform_indices = @transform_5, window_bounds = array<i64: 2, 8, 128>}]} {
    %c0_i32 = arith.constant 0 : i32
    %0 = arith.cmpi eq, %arg2, %c0_i32 : i32
    %1 = arith.extui %0 : i1 to i32
    %c0_i32_0 = arith.constant 0 : i32
    %2 = arith.cmpi ne, %1, %c0_i32_0 : i32
    scf.if %2 {
      %cst_24 = arith.constant 0.000000e+00 : f32
      %42 = vector.broadcast %cst_24 : f32 to vector<2x8x128xf32>
      %c0_25 = arith.constant 0 : index
      %c0_26 = arith.constant 0 : index
      %c0_27 = arith.constant 0 : index
      %43 = vector.load %arg8[%c0_25, %c0_26, %c0_27] : memref<2x8x128xf32, #tpu.memory_space<vmem>>, vector<2x8x128xf32>
      tpu.vector_store %arg8[%c0_25, %c0_26, %c0_27], %42 {strides = array<i32>} : memref<2x8x128xf32, #tpu.memory_space<vmem>>, vector<2x8x128xf32>,
    } else {
    }
    %c0 = arith.constant 0 : index
    %c0_1 = arith.constant 0 : index
    %3 = vector.load %arg4[%c0, %c0_1] : memref<64x128xf32, #tpu.memory_space<vmem>>, vector<64x128xf32>
    %c0_2 = arith.constant 0 : index
    %c0_3 = arith.constant 0 : index
    %4 = vector.load %arg5[%c0_2, %c0_3] : memref<64x128xf32, #tpu.memory_space<vmem>>, vector<64x128xf32>
    %c0_i32_4 = arith.constant 0 : i32
    %5 = arith.index_cast %c0_i32_4 : i32 to index
    %c0_5 = arith.constant 0 : index
    %c0_6 = arith.constant 0 : index
    %6 = vector.load %arg6[%5, %c0_5, %c0_6] : memref<2x64x128xf32, #tpu.memory_space<vmem>>, vector<1x64x128xf32>
    %7 = vector.shape_cast %6 : vector<1x64x128xf32> to vector<64x128xf32>
    %8 = arith.mulf %7, %4 : vector<64x128xf32>
    %9 = arith.addf %3, %8 : vector<64x128xf32>
    %10 = arith.index_cast %c0_i32_4 : i32 to index
    %c0_7 = arith.constant 0 : index
    %c0_8 = arith.constant 0 : index
    %11 = vector.load %arg8[%10, %c0_7, %c0_8] : memref<2x8x128xf32, #tpu.memory_space<vmem>>, vector<1x8x128xf32>
    %12 = vector.shape_cast %11 : vector<1x8x128xf32> to vector<8x128xf32>
    %13 = arith.index_cast %c0_i32_4 : i32 to index
    %c0_9 = arith.constant 0 : index
    %c0_10 = arith.constant 0 : index
    %14 = vector.load %arg3[%13, %c0_9, %c0_10] : memref<2x8x64xf32, #tpu.memory_space<vmem>>, vector<1x8x64xf32>
    %15 = vector.shape_cast %14 : vector<1x8x64xf32> to vector<8x64xf32>
    %cst = arith.constant dense<0.000000e+00> : vector<8x128xf32>
    %16 = tpu.matmul %15, %9, %cst {dimension_numbers = #tpu.dot_dimension_numbers<[1], [0], [0], [1], [0, 0, 1, 1], [], []>} : vector<8x64xf32>, vector<64x128xf32>, vector<8x128xf32> -> vector<8x128xf32>
    %17 = arith.addf %12, %16 : vector<8x128xf32>
    %18 = arith.index_cast %c0_i32_4 : i32 to index
    %c0_11 = arith.constant 0 : index
    %c0_12 = arith.constant 0 : index
    %19 = vector.load %arg8[%18, %c0_11, %c0_12] : memref<2x8x128xf32, #tpu.memory_space<vmem>>, vector<1x8x128xf32>
    %20 = vector.shape_cast %19 : vector<1x8x128xf32> to vector<8x128xf32>
    %21 = vector.shape_cast %17 : vector<8x128xf32> to vector<1x8x128xf32>
    tpu.vector_store %arg8[%18, %c0_11, %c0_12], %21 {strides = array<i32>} : memref<2x8x128xf32, #tpu.memory_space<vmem>>, vector<1x8x128xf32>,
    %c1_i32 = arith.constant 1 : i32
    %22 = arith.index_cast %c1_i32 : i32 to index
    %c0_13 = arith.constant 0 : index
    %c0_14 = arith.constant 0 : index
    %23 = vector.load %arg6[%22, %c0_13, %c0_14] : memref<2x64x128xf32, #tpu.memory_space<vmem>>, vector<1x64x128xf32>
    %24 = vector.shape_cast %23 : vector<1x64x128xf32> to vector<64x128xf32>
    %25 = arith.mulf %24, %4 : vector<64x128xf32>
    %26 = arith.addf %3, %25 : vector<64x128xf32>
    %27 = arith.index_cast %c1_i32 : i32 to index
    %c0_15 = arith.constant 0 : index
    %c0_16 = arith.constant 0 : index
    %28 = vector.load %arg8[%27, %c0_15, %c0_16] : memref<2x8x128xf32, #tpu.memory_space<vmem>>, vector<1x8x128xf32>
    %29 = vector.shape_cast %28 : vector<1x8x128xf32> to vector<8x128xf32>
    %30 = arith.index_cast %c1_i32 : i32 to index
    %c0_17 = arith.constant 0 : index
    %c0_18 = arith.constant 0 : index
    %31 = vector.load %arg3[%30, %c0_17, %c0_18] : memref<2x8x64xf32, #tpu.memory_space<vmem>>, vector<1x8x64xf32>
    %32 = vector.shape_cast %31 : vector<1x8x64xf32> to vector<8x64xf32>
    %cst_19 = arith.constant dense<0.000000e+00> : vector<8x128xf32>
    %33 = tpu.matmul %32, %26, %cst_19 {dimension_numbers = #tpu.dot_dimension_numbers<[1], [0], [0], [1], [0, 0, 1, 1], [], []>} : vector<8x64xf32>, vector<64x128xf32>, vector<8x128xf32> -> vector<8x128xf32>
    %34 = arith.addf %29, %33 : vector<8x128xf32>
    %35 = arith.index_cast %c1_i32 : i32 to index
    %c0_20 = arith.constant 0 : index
    %c0_21 = arith.constant 0 : index
    %36 = vector.load %arg8[%35, %c0_20, %c0_21] : memref<2x8x128xf32, #tpu.memory_space<vmem>>, vector<1x8x128xf32>
    %37 = vector.shape_cast %36 : vector<1x8x128xf32> to vector<8x128xf32>
    %38 = vector.shape_cast %34 : vector<8x128xf32> to vector<1x8x128xf32>
    tpu.vector_store %arg8[%35, %c0_20, %c0_21], %38 {strides = array<i32>} : memref<2x8x128xf32, #tpu.memory_space<vmem>>, vector<1x8x128xf32>,
    %c2_i32 = arith.constant 2 : i32
    %c0_i32_22 = arith.constant 0 : i32
    %39 = arith.cmpi eq, %arg2, %c0_i32_22 : i32
    %40 = arith.extui %39 : i1 to i32
    %c0_i32_23 = arith.constant 0 : i32
    %41 = arith.cmpi ne, %40, %c0_i32_23 : i32
    scf.if %41 {
      %c0_24 = arith.constant 0 : index
      %c0_25 = arith.constant 0 : index
      %c0_26 = arith.constant 0 : index
      %42 = vector.load %arg8[%c0_24, %c0_25, %c0_26] : memref<2x8x128xf32, #tpu.memory_space<vmem>>, vector<2x8x128xf32>
      %c0_27 = arith.constant 0 : index
      %c0_28 = arith.constant 0 : index
      %c0_29 = arith.constant 0 : index
      %43 = vector.load %arg7[%c0_27, %c0_28, %c0_29] : memref<2x1x128xf32, #tpu.memory_space<vmem>>, vector<2x1x128xf32>
      %44 = vector.broadcast %43 : vector<2x1x128xf32> to vector<2x8x128xf32>
      %45 = arith.addf %42, %44 : vector<2x8x128xf32>
      %c0_30 = arith.constant 0 : index
      %c0_31 = arith.constant 0 : index
      %c0_32 = arith.constant 0 : index
      %46 = vector.load %arg8[%c0_30, %c0_31, %c0_32] : memref<2x8x128xf32, #tpu.memory_space<vmem>>, vector<2x8x128xf32>
      tpu.vector_store %arg8[%c0_30, %c0_31, %c0_32], %45 {strides = array<i32>} : memref<2x8x128xf32, #tpu.memory_space<vmem>>, vector<2x8x128xf32>,
    } else {
    }
    return
  }
  func.func @transform_0(%arg0: i32, %arg1: i32, %arg2: i32) -> (i32, i32, i32) {
    %c0_i32 = arith.constant 0 : i32
    %c0_i32_0 = arith.constant 0 : i32
    return %arg1, %c0_i32, %arg2 : i32, i32, i32
  }
  func.func @transform_1(%arg0: i32, %arg1: i32, %arg2: i32) -> (i32, i32) {
    %c0_i32 = arith.constant 0 : i32
    return %arg2, %arg0 : i32, i32
  }
  func.func @transform_2(%arg0: i32, %arg1: i32, %arg2: i32) -> (i32, i32) {
    %c0_i32 = arith.constant 0 : i32
    return %arg2, %arg0 : i32, i32
  }
  func.func @transform_3(%arg0: i32, %arg1: i32, %arg2: i32) -> (i32, i32, i32) {
    %c0_i32 = arith.constant 0 : i32
    return %arg1, %arg2, %arg0 : i32, i32, i32
  }
  func.func @transform_4(%arg0: i32, %arg1: i32, %arg2: i32) -> (i32, i32, i32) {
    %c0_i32 = arith.constant 0 : i32
    %c0_i32_0 = arith.constant 0 : i32
    return %arg1, %c0_i32, %arg0 : i32, i32, i32
  }
  func.func @transform_5(%arg0: i32, %arg1: i32, %arg2: i32) -> (i32, i32, i32) {
    %c0_i32 = arith.constant 0 : i32
    %c0_i32_0 = arith.constant 0 : i32
    return %arg1, %c0_i32, %arg0 : i32, i32, i32
  }
}

</mosaic_0001>

<llo_original>
// kernel: tpu_custom_call.1
$region0: #{tpu_custom_call.1}
  #allocation0 [shape = 'u32[]', space=smem, size = 0x4, offset = 0x4, fixed_abs, tag = 'smem constant byte address 0x4 - core index']
  #allocation1 [shape = 'u32[144,128]{1,0:T(1,128)}', space=vmem, size = 0x12000, scoped, tag = 'internal scratch']
  %s0 = inlined_call_operand.hbm [shape: f32[4,8,64], index: 0, kind: input, shape index: {}]
  %s1 = inlined_call_operand.hbm [shape: f32[64,128], index: 1, kind: input, shape index: {}]
  %s2 = inlined_call_operand.hbm [shape: f32[64,128], index: 2, kind: input, shape index: {}]
  %s3 = inlined_call_operand.hbm [shape: f32[4,64,128], index: 3, kind: input, shape index: {}]
  %s4 = inlined_call_operand.vmem [shape: f32[4,1,128], index: 4, kind: input, shape index: {}]
  %s5 = inlined_call_operand.hbm [shape: f32[4,8,128], index: 5, kind: output, shape index: {}]
  %s6 = sld [smem:[#allocation0]]
  $region77: #{tpu_custom_call.1} parent=0
    _
  %s8 = ssub.s32 1, %s6
  %s9 = scalar_select 0, %s8, %s6
  $region1: #{tpu_custom_call.1} parent=0
    #allocation2 [shape = 'u8[16384]{0}', space=vmem, size = 0x4000, scoped, tag = 'input window, operand 0']
    #allocation3 [shape = 's32[2]{0}', space=sflag, size = 0x8, scoped, tag = 'scoped memory for tpu_custom_call.1']
    #allocation4 [shape = 's32[2]{0}', space=sflag, size = 0x8, scoped, tag = 'scoped memory for tpu_custom_call.1']
    #allocation5 [shape = 'u8[32768]{0}', space=vmem, size = 0x8000, scoped, tag = 'input window, operand 1, single buffered']
    #allocation6 [shape = 's32[1]{0}', space=sflag, size = 0x4, scoped, tag = 'scoped memory for tpu_custom_call.1']
    #allocation7 [shape = 'u8[32768]{0}', space=vmem, size = 0x8000, scoped, tag = 'input window, operand 2, single buffered']
    #allocation8 [shape = 'u8[131072]{0}', space=vmem, size = 0x20000, scoped, tag = 'input window, operand 3']
    #allocation9 [shape = 's32[2]{0}', space=sflag, size = 0x8, scoped, tag = 'scoped memory for tpu_custom_call.1']
    #allocation10 [shape = 'u8[16384]{0}', space=vmem, size = 0x4000, scoped, tag = 'output window, operand 0']
    %10 = vsyncpa [#allocation3], 0
    %s11 = scalar_lea.sflag [#allocation3], 1
    %12 = vsyncpa %s11, 0
    %13 = vsyncpa [#allocation6], 0
    %14 = vsyncpa [#allocation9], 0
    %s15 = scalar_lea.sflag [#allocation9], 1
    %16 = vsyncpa %s15, 0
    %17 = vsyncpa [#allocation4], 0
    %s18 = scalar_lea.sflag [#allocation4], 1
    %19 = vsyncpa %s18, 0
    loop: start=0, step=1, limit=4
    $region2: #{tpu_custom_call.1} parent=1 // loop_pre_header
      _
    $region3: #{tpu_custom_call.1} parent=1 // loop_header
      %s21 = sphi 0, %s25
      %p22 = scmp.ge.s32.totalorder %s21, 4
      %s28 = sphi 0, %s47
      %s29 = sphi 0, %s43
      %s30 = sphi 0, %s39
      %s31 = sphi 0, %s28
      %s32 = sphi 0, %s29
      %s33 = sphi 0, %s30
      %s34 = sphi 0, %s31
      %s35 = sphi 0, %s32
      %s36 = sphi 0, %s33
      %s52 = sphi 0, %s54
      %s55 = sphi 0, %s52
      %s56 = sphi 0, %s55
      %s72 = sphi 0, %s56
      %s80 = sphi 0, %s82
      %s83 = sphi 0, %s80
      %s84 = sphi 0, %s83
      %s100 = sphi 0, %s84
      %s108 = sphi 0, %s110
      %s111 = sphi 0, %s108
      %s112 = sphi 0, %s111
      %s128 = sphi 0, %s112
      %s138 = sphi 0, %s140
      %s141 = sphi 0, %s138
      %s142 = sphi 0, %s141
      %s158 = sphi 0, %s142
      %s166 = sphi 0, %s168
      %s169 = sphi 0, %s166
      %s170 = sphi 0, %s169
      %s186 = sphi 0, %s170
      %s194 = sphi 0, %s196
      %s197 = sphi 0, %s194
      %s198 = sphi 0, %s197
      %s214 = sphi 0, %s198
    $region4: #{tpu_custom_call.1} parent=1 // loop_header_branch
      %24 = sbr.rel (%p22) target = $region8
    $region5: #{tpu_custom_call.1} parent=1 // loop_body
      %s26 = ssub.s32 %s21, 1
      %s27 = ssub.s32 %s21, 2
      %s37 = sadd.s32 1, %s30
      %p38 = scmp.ge.s32.totalorder %s37, 1
      %s39 = scalar_select %p38, 0, %s37
      %s40 = sadd.s32 1, %s29
      %s41 = scalar_select %p38, %s40, %s29
      %p42 = scmp.ge.s32.totalorder %s41, 2
      %s43 = scalar_select %p42, 0, %s41
      %s44 = sadd.s32 1, %s28
      %s45 = scalar_select %p42, %s44, %s28
      %p46 = scmp.ge.s32.totalorder %s45, 1
      %s47 = scalar_select %p46, 0, %s45
      %s48 = ssub.s32 %s29, %s43
      %s49 = ssub.s32 %s30, %s39
      %s50 = sor.u32 %s48, %s49
      %p51 = scmp.eq.s32.totalorder %s50, 0
      %s53 = sadd.s32 %s52, 1
      %s54 = scalar_select %p51, %s52, %s53
      %p57 = pneg %p51
      %p58 = scmp.eq.s32.totalorder %s21, 1
      %p59 = por %p57, %p58
      %p60 = scmp.ne.s32.totalorder %s52, %s55
      %p61 = scmp.eq.s32.totalorder %s21, 0
      %p62 = por %p60, %p61
      %p63 = scmp.ne.s32.totalorder %s52, %s55
      %p64 = scmp.eq.s32.totalorder %s26, 1
      %p65 = por %p63, %p64
      %p66 = scmp.ne.s32.totalorder %s55, %s56
      %p67 = scmp.eq.s32.totalorder %s26, 0
      %p68 = por %p66, %p67
      %p69 = scmp.ne.s32.totalorder %s55, %s56
      %p70 = scmp.eq.s32.totalorder %s27, 1
      %p71 = por %p69, %p70
      %p73 = scmp.ne.s32.totalorder %s56, %s72
      %p74 = scmp.eq.s32.totalorder %s27, 0
      %p75 = por %p73, %p74
      %s76 = ssub.s32 %s30, %s39
      %s77 = ssub.s32 %s28, %s47
      %s78 = sor.u32 %s76, %s77
      %p79 = scmp.eq.s32.totalorder %s78, 0
      %s81 = sadd.s32 %s80, 1
      %s82 = scalar_select %p79, %s80, %s81
      %p85 = pneg %p79
      %p86 = scmp.eq.s32.totalorder %s21, 1
      %p87 = por %p85, %p86
      %p88 = scmp.ne.s32.totalorder %s80, %s83
      %p89 = scmp.eq.s32.totalorder %s21, 0
      %p90 = por %p88, %p89
      %p91 = scmp.ne.s32.totalorder %s80, %s83
      %p92 = scmp.eq.s32.totalorder %s26, 1
      %p93 = por %p91, %p92
      %p94 = scmp.ne.s32.totalorder %s83, %s84
      %p95 = scmp.eq.s32.totalorder %s26, 0
      %p96 = por %p94, %p95
      %p97 = scmp.ne.s32.totalorder %s83, %s84
      %p98 = scmp.eq.s32.totalorder %s27, 1
      %p99 = por %p97, %p98
      %p101 = scmp.ne.s32.totalorder %s84, %s100
      %p102 = scmp.eq.s32.totalorder %s27, 0
      %p103 = por %p101, %p102
      %s104 = ssub.s32 %s30, %s39
      %s105 = ssub.s32 %s28, %s47
      %s106 = sor.u32 %s104, %s105
      %p107 = scmp.eq.s32.totalorder %s106, 0
      %s109 = sadd.s32 %s108, 1
      %s110 = scalar_select %p107, %s108, %s109
      %p113 = pneg %p107
      %p114 = scmp.eq.s32.totalorder %s21, 1
      %p115 = por %p113, %p114
      %p116 = scmp.ne.s32.totalorder %s108, %s111
      %p117 = scmp.eq.s32.totalorder %s21, 0
      %p118 = por %p116, %p117
      %p119 = scmp.ne.s32.totalorder %s108, %s111
      %p120 = scmp.eq.s32.totalorder %s26, 1
      %p121 = por %p119, %p120
      %p122 = scmp.ne.s32.totalorder %s111, %s112
      %p123 = scmp.eq.s32.totalorder %s26, 0
      %p124 = por %p122, %p123
      %p125 = scmp.ne.s32.totalorder %s111, %s112
      %p126 = scmp.eq.s32.totalorder %s27, 1
      %p127 = por %p125, %p126
      %p129 = scmp.ne.s32.totalorder %s112, %s128
      %p130 = scmp.eq.s32.totalorder %s27, 0
      %p131 = por %p129, %p130
      %s132 = ssub.s32 %s29, %s43
      %s133 = ssub.s32 %s30, %s39
      %s134 = sor.u32 %s132, %s133
      %s135 = ssub.s32 %s28, %s47
      %s136 = sor.u32 %s134, %s135
      %p137 = scmp.eq.s32.totalorder %s136, 0
      %s139 = sadd.s32 %s138, 1
      %s140 = scalar_select %p137, %s138, %s139
      %p143 = pneg %p137
      %p144 = scmp.eq.s32.totalorder %s21, 1
      %p145 = por %p143, %p144
      %p146 = scmp.ne.s32.totalorder %s138, %s141
      %p147 = scmp.eq.s32.totalorder %s21, 0
      %p148 = por %p146, %p147
      %p149 = scmp.ne.s32.totalorder %s138, %s141
      %p150 = scmp.eq.s32.totalorder %s26, 1
      %p151 = por %p149, %p150
      %p152 = scmp.ne.s32.totalorder %s141, %s142
      %p153 = scmp.eq.s32.totalorder %s26, 0
      %p154 = por %p152, %p153
      %p155 = scmp.ne.s32.totalorder %s141, %s142
      %p156 = scmp.eq.s32.totalorder %s27, 1
      %p157 = por %p155, %p156
      %p159 = scmp.ne.s32.totalorder %s142, %s158
      %p160 = scmp.eq.s32.totalorder %s27, 0
      %p161 = por %p159, %p160
      %s162 = ssub.s32 %s29, %s43
      %s163 = ssub.s32 %s28, %s47
      %s164 = sor.u32 %s162, %s163
      %p165 = scmp.eq.s32.totalorder %s164, 0
      %s167 = sadd.s32 %s166, 1
      %s168 = scalar_select %p165, %s166, %s167
      %p171 = pneg %p165
      %p172 = scmp.eq.s32.totalorder %s21, 1
      %p173 = por %p171, %p172
      %p174 = scmp.ne.s32.totalorder %s166, %s169
      %p175 = scmp.eq.s32.totalorder %s21, 0
      %p176 = por %p174, %p175
      %p177 = scmp.ne.s32.totalorder %s166, %s169
      %p178 = scmp.eq.s32.totalorder %s26, 1
      %p179 = por %p177, %p178
      %p180 = scmp.ne.s32.totalorder %s169, %s170
      %p181 = scmp.eq.s32.totalorder %s26, 0
      %p182 = por %p180, %p181
      %p183 = scmp.ne.s32.totalorder %s169, %s170
      %p184 = scmp.eq.s32.totalorder %s27, 1
      %p185 = por %p183, %p184
      %p187 = scmp.ne.s32.totalorder %s170, %s186
      %p188 = scmp.eq.s32.totalorder %s27, 0
      %p189 = por %p187, %p188
      %s190 = ssub.s32 %s29, %s43
      %s191 = ssub.s32 %s28, %s47
      %s192 = sor.u32 %s190, %s191
      %p193 = scmp.eq.s32.totalorder %s192, 0
      %s195 = sadd.s32 %s194, 1
      %s196 = scalar_select %p193, %s194, %s195
      %p199 = pneg %p193
      %p200 = scmp.eq.s32.totalorder %s21, 1
      %p201 = por %p199, %p200
      %p202 = scmp.ne.s32.totalorder %s194, %s197
      %p203 = scmp.eq.s32.totalorder %s21, 0
      %p204 = por %p202, %p203
      %p205 = scmp.ne.s32.totalorder %s194, %s197
      %p206 = scmp.eq.s32.totalorder %s26, 1
      %p207 = por %p205, %p206
      %p208 = scmp.ne.s32.totalorder %s197, %s198
      %p209 = scmp.eq.s32.totalorder %s26, 0
      %p210 = por %p208, %p209
      %p211 = scmp.ne.s32.totalorder %s197, %s198
      %p212 = scmp.eq.s32.totalorder %s27, 1
      %p213 = por %p211, %p212
      %p215 = scmp.ne.s32.totalorder %s198, %s214
      %p216 = scmp.eq.s32.totalorder %s27, 0
      %p217 = por %p215, %p216
      %p218 = scmp.le.s32.totalorder 1, %s21
      %p219 = scmp.lt.s32.totalorder %s21, 3
      %p220 = pnand %p218, %p219
      %p221 = pneg %p220
      // Predicated region
      $region9: #{tpu_custom_call.1} parent=5 // pred_check
        _
      $region10: #{tpu_custom_call.1} parent=5 // pred_check_branch
        %223 = sbr.rel (%p220) target = $region12
      $region11: #{tpu_custom_call.1} parent=5 // pred_region
        %s224 = ssub.s32 %s21, 1
        // Predicated region
        $region13: #{tpu_custom_call.1} parent=11 // pred_check
          %p225 = pneg %p96
        $region14: #{tpu_custom_call.1} parent=11 // pred_check_branch
          %227 = sbr.rel (%p225) target = $region16
        $region15: #{tpu_custom_call.1} parent=11 // pred_region
          %s228 = smul.u32 8, %s33
          %s230 = ssub.s32 1024, 1024
          %231 = vsyncadd [#allocation6], %s230
          %s232 = sadd.s32 %s31, %s228
          %s233 = smul.addr %s232, 128
          %s234 = scalar_lea.hbm %s1, %s233
          %s235 = sshll.u32 [#allocation5], 4
          %s236 = int_to_ptr.vmem [resolvable:$true] %s235
          %241 = dma.hbm_to_vmem [thread:$0]  %s234, 1024, %s236, [#allocation6], 128, 128, 8
        $region16: #{tpu_custom_call.1} parent=11 // pred_fallthru
          _
        // Predicated region
        $region17: #{tpu_custom_call.1} parent=11 // pred_check
          %p242 = pneg %p124
        $region18: #{tpu_custom_call.1} parent=11 // pred_check_branch
          %244 = sbr.rel (%p242) target = $region20
        $region19: #{tpu_custom_call.1} parent=11 // pred_region
          %s245 = smul.u32 8, %s33
          %s247 = ssub.s32 1024, 1024
          %248 = vsyncadd [#allocation6], %s247
          %s249 = sadd.s32 %s31, %s245
          %s250 = smul.addr %s249, 128
          %s251 = scalar_lea.hbm %s2, %s250
          %s252 = sshll.u32 [#allocation7], 4
          %s253 = int_to_ptr.vmem [resolvable:$true] %s252
          %258 = dma.hbm_to_vmem [thread:$0]  %s251, 1024, %s253, [#allocation6], 128, 128, 8
        $region20: #{tpu_custom_call.1} parent=11 // pred_fallthru
          _
      $region12: #{tpu_custom_call.1} parent=5 // pred_fallthru
        _
      %p259 = scmp.lt.s32.totalorder %s21, 2
      // Predicated region
      $region21: #{tpu_custom_call.1} parent=5 // pred_check
        %p260 = pneg %p259
      $region22: #{tpu_custom_call.1} parent=5 // pred_check_branch
        %262 = sbr.rel (%p260) target = $region24
      $region23: #{tpu_custom_call.1} parent=5 // pred_region
        // Predicated region
        $region25: #{tpu_custom_call.1} parent=23 // pred_check
          %p263 = pneg %p62
        $region26: #{tpu_custom_call.1} parent=23 // pred_check_branch
          %265 = sbr.rel (%p263) target = $region28
        $region27: #{tpu_custom_call.1} parent=23 // pred_region
          %s266 = sand.u32 %s52, 1
          %s267 = scalar_lea.sflag [#allocation3], %s266
          %s268 = sand.u32 %s52, 1
          %s269 = smul.addr %s268, 16
          %s270 = scalar_lea.vmem [#allocation2], %s269
          %s271 = smul.u32 2, %s29
          %s273 = ssub.s32 256, 256
          %274 = vsyncadd %s267, %s273
          %s275 = sadd.s32 %s30, %s271
          %s276 = smul.addr %s275, 128
          %s277 = scalar_lea.hbm %s0, %s276
          %s278 = sshll.u32 %s270, 4
          %s279 = int_to_ptr.vmem [resolvable:$true] %s278
          %284 = dma.hbm_to_vmem [thread:$0]  %s277, 256, %s279, %s267, 128, 128, 8
        $region28: #{tpu_custom_call.1} parent=23 // pred_fallthru
          _
        // Predicated region
        $region29: #{tpu_custom_call.1} parent=23 // pred_check
          %p285 = pneg %p148
        $region30: #{tpu_custom_call.1} parent=23 // pred_check_branch
          %287 = sbr.rel (%p285) target = $region32
        $region31: #{tpu_custom_call.1} parent=23 // pred_region
          %s288 = sand.u32 %s138, 1
          %s289 = scalar_lea.sflag [#allocation9], %s288
          %s290 = sand.u32 %s138, 1
          %s291 = smul.addr %s290, 128
          %s292 = scalar_lea.vmem [#allocation8], %s291
          %s293 = smul.u32 2, %s29
          %s294 = smul.u32 8, %s30
          %s296 = ssub.s32 2048, 2048
          %297 = vsyncadd %s289, %s296
          %s298 = sadd.s32 %s28, %s294
          %s299 = smul.addr %s293, 8
          %s300 = sadd.s32 %s298, %s299
          %s301 = smul.addr %s300, 128
          %s302 = scalar_lea.hbm %s3, %s301
          %s303 = sshll.u32 %s292, 4
          %s304 = int_to_ptr.vmem [resolvable:$true] %s303
          %309 = dma.hbm_to_vmem [thread:$0]  %s302, 2048, %s304, %s289, 128, 128, 8
        $region32: #{tpu_custom_call.1} parent=23 // pred_fallthru
          _
        // Predicated region
        $region33: #{tpu_custom_call.1} parent=23 // pred_check
          %p310 = pneg %p176
        $region34: #{tpu_custom_call.1} parent=23 // pred_check_branch
          %312 = sbr.rel (%p310) target = $region36
        $region35: #{tpu_custom_call.1} parent=23 // pred_region
          %s313 = smul.u32 2, %s29
          %p314 = scmp.lt.s32.totalorder %s313, 3
          %s315 = scalar_select %p314, %s313, 3
          %p316 = scmp.lt.s32.totalorder %s28, 0
          %s317 = scalar_select %p316, %s28, 0
          %s318 = sadd.s32 %s317, %s315
          %s319 = scalar_lea.vmem %s4, %s318
          %s320 = smul.u32 2, %s29
        $region36: #{tpu_custom_call.1} parent=23 // pred_fallthru
          _
      $region24: #{tpu_custom_call.1} parent=5 // pred_fallthru
        _
      %p321 = scmp.le.s32.totalorder 1, %s21
      %p322 = scmp.lt.s32.totalorder %s21, 3
      %p323 = pnand %p321, %p322
      %p324 = pneg %p323
      // Predicated region
      $region37: #{tpu_custom_call.1} parent=5 // pred_check
        _
      $region38: #{tpu_custom_call.1} parent=5 // pred_check_branch
        %326 = sbr.rel (%p323) target = $region40
      $region39: #{tpu_custom_call.1} parent=5 // pred_region
        %s327 = ssub.s32 %s21, 1
        %s328 = sand.u32 %s55, 1
        %s329 = scalar_lea.sflag [#allocation3], %s328
        %s330 = sand.u32 %s55, 1
        %s331 = smul.addr %s330, 16
        %s332 = scalar_lea.vmem [#allocation2], %s331
        // Predicated region
        $region41: #{tpu_custom_call.1} parent=39 // pred_check
          %p333 = pneg %p68
        $region42: #{tpu_custom_call.1} parent=39 // pred_check_branch
          %335 = sbr.rel (%p333) target = $region44
        $region43: #{tpu_custom_call.1} parent=39 // pred_region
          %336 = dma.done %s329, 256
        $region44: #{tpu_custom_call.1} parent=39 // pred_fallthru
          _
        // Predicated region
        $region45: #{tpu_custom_call.1} parent=39 // pred_check
          %p337 = pneg %p96
        $region46: #{tpu_custom_call.1} parent=39 // pred_check_branch
          %339 = sbr.rel (%p337) target = $region48
        $region47: #{tpu_custom_call.1} parent=39 // pred_region
          %340 = dma.done [#allocation6], 1024
        $region48: #{tpu_custom_call.1} parent=39 // pred_fallthru
          _
        // Predicated region
        $region49: #{tpu_custom_call.1} parent=39 // pred_check
          %p341 = pneg %p124
        $region50: #{tpu_custom_call.1} parent=39 // pred_check_branch
          %343 = sbr.rel (%p341) target = $region52
        $region51: #{tpu_custom_call.1} parent=39 // pred_region
          %344 = dma.done [#allocation6], 1024
        $region52: #{tpu_custom_call.1} parent=39 // pred_fallthru
          _
        %s345 = sand.u32 %s141, 1
        %s346 = scalar_lea.sflag [#allocation9], %s345
        %s347 = sand.u32 %s141, 1
        %s348 = smul.addr %s347, 128
        %s349 = scalar_lea.vmem [#allocation8], %s348
        // Predicated region
        $region53: #{tpu_custom_call.1} parent=39 // pred_check
          %p350 = pneg %p154
        $region54: #{tpu_custom_call.1} parent=39 // pred_check_branch
          %352 = sbr.rel (%p350) target = $region56
        $region55: #{tpu_custom_call.1} parent=39 // pred_region
          %353 = dma.done %s346, 2048
        $region56: #{tpu_custom_call.1} parent=39 // pred_fallthru
          _
        %s354 = sand.u32 %s55, 1
        %s355 = scalar_lea.sflag [#allocation3], %s354
        %s356 = sand.u32 %s55, 1
        %s357 = smul.addr %s356, 16
        %s358 = scalar_lea.vmem [#allocation2], %s357
        %p359 = pneg %p68
        %p360 = pneg %p65
        %p361 = pneg %p96
        %p362 = pneg %p93
        %p363 = pneg %p124
        %p364 = pneg %p121
        %s365 = sand.u32 %s141, 1
        %s366 = scalar_lea.sflag [#allocation9], %s365
        %s367 = sand.u32 %s141, 1
        %s368 = smul.addr %s367, 128
        %s369 = scalar_lea.vmem [#allocation8], %s368
        %p370 = pneg %p154
        %p371 = pneg %p151
        %s372 = smul.u32 2, %s32
        %p373 = scmp.lt.s32.totalorder %s372, 3
        %s374 = scalar_select %p373, %s372, 3
        %p375 = scmp.lt.s32.totalorder %s31, 0
        %s376 = scalar_select %p375, %s31, 0
        %s377 = sadd.s32 %s376, %s374
        %s378 = scalar_lea.vmem %s4, %s377
        %p379 = pneg %p182
        %p380 = pneg %p179
        %p381 = pneg %p210
        %p382 = pneg %p207
        %s383 = sand.u32 %s197, 1
        %s384 = scalar_lea.sflag [#allocation4], %s383
        %s385 = sand.u32 %s197, 1
        %s386 = smul.addr %s385, 16
        %s387 = scalar_lea.vmem [#allocation10], %s386
        %s388 = smul.u32 2, %s32
        %s389 = smul.u32 8, %s33
        %s390 = smul.u32 8, %s33
        %s391 = smul.u32 2, %s32
        %s392 = smul.u32 8, %s33
        %s393 = smul.u32 2, %s32
        %p394 = scmp.lt.s32.totalorder %s393, 3
        %s395 = scalar_select %p394, %s393, 3
        %p396 = scmp.lt.s32.totalorder %s31, 0
        %s397 = scalar_select %p396, %s31, 0
        %s398 = sadd.s32 %s397, %s395
        %s399 = scalar_lea.vmem %s4, %s398
        %s400 = smul.u32 2, %s32
        %s401 = smul.u32 2, %s32
        %p402 = scmp.eq.s32.totalorder %s33, 0
        // Predicated region
        $region57: #{tpu_custom_call.1} parent=39 // pred_check
          %p403 = pneg %p402
        $region58: #{tpu_custom_call.1} parent=39 // pred_check_branch
          %405 = sbr.rel (%p403) target = $region60
        $region59: #{tpu_custom_call.1} parent=39 // pred_region
          %406 = vst [vmem:[%s387] sm:$0xff] 0.0
          %407 = vst [vmem:[%s387 + $0x8] sm:$0xff] 0.0
        $region60: #{tpu_custom_call.1} parent=39 // pred_fallthru
          _
        %v408 = vld [vmem:[#allocation5] sm:$0xff]
        %v409 = vld [vmem:[#allocation5 + $0x8] sm:$0xff]
        %v410 = vld [vmem:[#allocation5 + $0x10] sm:$0xff]
        %v411 = vld [vmem:[#allocation5 + $0x18] sm:$0xff]
        %v412 = vld [vmem:[#allocation5 + $0x20] sm:$0xff]
        %v413 = vld [vmem:[#allocation5 + $0x28] sm:$0xff]
        %v414 = vld [vmem:[#allocation5 + $0x30] sm:$0xff]
        %v415 = vld [vmem:[#allocation5 + $0x38] sm:$0xff]
        %v416 = vld [vmem:[#allocation7] sm:$0xff]
        %v417 = vld [vmem:[#allocation7 + $0x8] sm:$0xff]
        %v418 = vld [vmem:[#allocation7 + $0x10] sm:$0xff]
        %v419 = vld [vmem:[#allocation7 + $0x18] sm:$0xff]
        %v420 = vld [vmem:[#allocation7 + $0x20] sm:$0xff]
        %v421 = vld [vmem:[#allocation7 + $0x28] sm:$0xff]
        %v422 = vld [vmem:[#allocation7 + $0x30] sm:$0xff]
        %v423 = vld [vmem:[#allocation7 + $0x38] sm:$0xff]
        %v424 = vld [vmem:[%s349] sm:$0xff]
        %v425 = vld [vmem:[%s349 + $0x8] sm:$0xff]
        %v426 = vld [vmem:[%s349 + $0x10] sm:$0xff]
        %v427 = vld [vmem:[%s349 + $0x18] sm:$0xff]
        %v428 = vld [vmem:[%s349 + $0x20] sm:$0xff]
        %v429 = vld [vmem:[%s349 + $0x28] sm:$0xff]
        %v430 = vld [vmem:[%s349 + $0x30] sm:$0xff]
        %v431 = vld [vmem:[%s349 + $0x38] sm:$0xff]
        %v432 = vmul.f32 %v424, %v416
        %v433 = vmul.f32 %v425, %v417
        %v434 = vmul.f32 %v426, %v418
        %v435 = vmul.f32 %v427, %v419
        %v436 = vmul.f32 %v428, %v420
        %v437 = vmul.f32 %v429, %v421
        %v438 = vmul.f32 %v430, %v422
        %v439 = vmul.f32 %v431, %v423
        %v440 = vadd.f32 %v408, %v432
        %v441 = vadd.f32 %v409, %v433
        %v442 = vadd.f32 %v410, %v434
        %v443 = vadd.f32 %v411, %v435
        %v444 = vadd.f32 %v412, %v436
        %v445 = vadd.f32 %v413, %v437
        %v446 = vadd.f32 %v414, %v438
        %v447 = vadd.f32 %v415, %v439
        %v448 = vld [vmem:[%s387] sm:$0xff]
        %v449 = vld [vmem:[%s332] sm:$0xff]
        %vm450 = vcmask 523264
        %v452 = vsel %vm450, %v449, 0
        %454 = vmatprep.subr.mxu0 0.0
        %455 = vmatpush1.msra.mxu0 %v440
        %456 = vmatprep.subr.mxu0 0.0
        %457 = vmatpush1.msra.mxu0 %v441
        %458 = vmatprep.subr.mxu0 0.0
        %459 = vmatpush1.msra.mxu0 %v442
        %460 = vmatprep.subr.mxu0 0.0
        %461 = vmatpush1.msra.mxu0 %v443
        %462 = vmatprep.subr.mxu0 0.0
        %463 = vmatpush1.msra.mxu0 %v444
        %464 = vmatprep.subr.mxu0 0.0
        %465 = vmatpush1.msra.mxu0 %v445
        %466 = vmatprep.subr.mxu0 0.0
        %467 = vmatpush1.msra.mxu0 %v446
        %468 = vmatprep.subr.mxu0 0.0
        %469 = vmatpush1.msra.mxu0 %v447
        %470 = vmatprep.subr.mxu0 0.0
        %471 = vmatpush1.msra.mxu0 0.0
        %472 = vmatprep.subr.mxu0 0.0
        %473 = vmatpush1.msra.mxu0 0.0
        %474 = vmatprep.subr.mxu0 0.0
        %475 = vmatpush1.msra.mxu0 0.0
        %476 = vmatprep.subr.mxu0 0.0
        %477 = vmatpush1.msra.mxu0 0.0
        %478 = vmatprep.subr.mxu0 0.0
        %479 = vmatpush1.msra.mxu0 0.0
        %480 = vmatprep.subr.mxu0 0.0
        %481 = vmatpush1.msra.mxu0 0.0
        %482 = vmatprep.subr.mxu0 0.0
        %483 = vmatpush1.msra.mxu0 0.0
        %484 = vmatprep.subr.mxu0 0.0
        %485 = vmatpush1.msra.mxu0 0.0
        %486 = vmatprep.subr.mxu0 0.0
        %487 = vmatpush1.msra.mxu0 0.0
        %488 = vmatprep.subr.mxu0 0.0
        %489 = vmatpush1.msra.mxu0 0.0
        %490 = vmatprep.subr.mxu0 0.0
        %491 = vmatpush1.msra.mxu0 0.0
        %492 = vmatprep.subr.mxu0 0.0
        %493 = vmatpush1.msra.mxu0 0.0
        %494 = vmatprep.subr.mxu0 0.0
        %495 = vmatpush1.msra.mxu0 0.0
        %496 = vmatprep.subr.mxu0 0.0
        %497 = vmatpush1.msra.mxu0 0.0
        %498 = vmatprep.subr.mxu0 0.0
        %499 = vmatpush1.msra.mxu0 0.0
        %500 = vmatprep.subr.mxu0 0.0
        %501 = vmatpush1.msra.mxu0 0.0
        %502 = vmatprep.subr.mxu0 0.0
        %503 = vmatpush1.msra.mxu0 0.0
        %504 = vmatprep.subr.mxu0 0.0
        %505 = vmatpush1.msra.mxu0 0.0
        %506 = vmatprep.subr.mxu0 0.0
        %507 = vmatpush1.msra.mxu0 0.0
        %508 = vmatprep.subr.mxu0 0.0
        %509 = vmatpush1.msra.mxu0 0.0
        %510 = vmatprep.subr.mxu0 0.0
        %511 = vmatpush1.msra.mxu0 0.0
        %512 = vmatprep.subr.mxu0 0.0
        %513 = vmatpush1.msra.mxu0 0.0
        %514 = vmatprep.subr.mxu0 0.0
        %515 = vmatpush1.msra.mxu0 0.0
        %516 = vmatprep.subr.mxu0 0.0
        %517 = vmatpush1.msra.mxu0 0.0
        %518 = vmatprep.mubr.f32.mxu0 0.0
        %519 = vmatmul.mubr.f32.gmra.mrb[0].mxu0 %v452
        %v520 = vpop.f32.mrb[0].mxu0
        %v521 = vadd.f32 0.0, %v520
        %v522 = vpop.f32.mrb[0].mxu0
        %523 = vdwg.mxu0
        %v524 = vadd.f32 %v448, %v521
        %525 = vst [vmem:[%s387] sm:$0xff] %v524
        %s526 = scalar_lea.vmem %s349, 64 [#allocation8]
        %v527 = vld [vmem:[%s526] sm:$0xff]
        %v528 = vld [vmem:[%s526 + $0x8] sm:$0xff]
        %v529 = vld [vmem:[%s526 + $0x10] sm:$0xff]
        %v530 = vld [vmem:[%s526 + $0x18] sm:$0xff]
        %v531 = vld [vmem:[%s526 + $0x20] sm:$0xff]
        %v532 = vld [vmem:[%s526 + $0x28] sm:$0xff]
        %v533 = vld [vmem:[%s526 + $0x30] sm:$0xff]
        %v534 = vld [vmem:[%s526 + $0x38] sm:$0xff]
        %v535 = vmul.f32 %v527, %v416
        %v536 = vmul.f32 %v528, %v417
        %v537 = vmul.f32 %v529, %v418
        %v538 = vmul.f32 %v530, %v419
        %v539 = vmul.f32 %v531, %v420
        %v540 = vmul.f32 %v532, %v421
        %v541 = vmul.f32 %v533, %v422
        %v542 = vmul.f32 %v534, %v423
        %v543 = vadd.f32 %v408, %v535
        %v544 = vadd.f32 %v409, %v536
        %v545 = vadd.f32 %v410, %v537
        %v546 = vadd.f32 %v411, %v538
        %v547 = vadd.f32 %v412, %v539
        %v548 = vadd.f32 %v413, %v540
        %v549 = vadd.f32 %v414, %v541
        %v550 = vadd.f32 %v415, %v542
        %s551 = scalar_lea.vmem %s387, 8 [#allocation10]
        %v552 = vld [vmem:[%s551] sm:$0xff]
        %s553 = scalar_lea.vmem %s332, 8 [#allocation2]
        %v554 = vld [vmem:[%s553] sm:$0xff]
        %v556 = vsel %vm450, %v554, 0
        %558 = vmatprep.subr.mxu0 0.0
        %559 = vmatpush1.msra.mxu0 %v543
        %560 = vmatprep.subr.mxu0 0.0
        %561 = vmatpush1.msra.mxu0 %v544
        %562 = vmatprep.subr.mxu0 0.0
        %563 = vmatpush1.msra.mxu0 %v545
        %564 = vmatprep.subr.mxu0 0.0
        %565 = vmatpush1.msra.mxu0 %v546
        %566 = vmatprep.subr.mxu0 0.0
        %567 = vmatpush1.msra.mxu0 %v547
        %568 = vmatprep.subr.mxu0 0.0
        %569 = vmatpush1.msra.mxu0 %v548
        %570 = vmatprep.subr.mxu0 0.0
        %571 = vmatpush1.msra.mxu0 %v549
        %572 = vmatprep.subr.mxu0 0.0
        %573 = vmatpush1.msra.mxu0 %v550
        %574 = vmatprep.subr.mxu0 0.0
        %575 = vmatpush1.msra.mxu0 0.0
        %576 = vmatprep.subr.mxu0 0.0
        %577 = vmatpush1.msra.mxu0 0.0
        %578 = vmatprep.subr.mxu0 0.0
        %579 = vmatpush1.msra.mxu0 0.0
        %580 = vmatprep.subr.mxu0 0.0
        %581 = vmatpush1.msra.mxu0 0.0
        %582 = vmatprep.subr.mxu0 0.0
        %583 = vmatpush1.msra.mxu0 0.0
        %584 = vmatprep.subr.mxu0 0.0
        %585 = vmatpush1.msra.mxu0 0.0
        %586 = vmatprep.subr.mxu0 0.0
        %587 = vmatpush1.msra.mxu0 0.0
        %588 = vmatprep.subr.mxu0 0.0
        %589 = vmatpush1.msra.mxu0 0.0
        %590 = vmatprep.subr.mxu0 0.0
        %591 = vmatpush1.msra.mxu0 0.0
        %592 = vmatprep.subr.mxu0 0.0
        %593 = vmatpush1.msra.mxu0 0.0
        %594 = vmatprep.subr.mxu0 0.0
        %595 = vmatpush1.msra.mxu0 0.0
        %596 = vmatprep.subr.mxu0 0.0
        %597 = vmatpush1.msra.mxu0 0.0
        %598 = vmatprep.subr.mxu0 0.0
        %599 = vmatpush1.msra.mxu0 0.0
        %600 = vmatprep.subr.mxu0 0.0
        %601 = vmatpush1.msra.mxu0 0.0
        %602 = vmatprep.subr.mxu0 0.0
        %603 = vmatpush1.msra.mxu0 0.0
        %604 = vmatprep.subr.mxu0 0.0
        %605 = vmatpush1.msra.mxu0 0.0
        %606 = vmatprep.subr.mxu0 0.0
        %607 = vmatpush1.msra.mxu0 0.0
        %608 = vmatprep.subr.mxu0 0.0
        %609 = vmatpush1.msra.mxu0 0.0
        %610 = vmatprep.subr.mxu0 0.0
        %611 = vmatpush1.msra.mxu0 0.0
        %612 = vmatprep.subr.mxu0 0.0
        %613 = vmatpush1.msra.mxu0 0.0
        %614 = vmatprep.subr.mxu0 0.0
        %615 = vmatpush1.msra.mxu0 0.0
        %616 = vmatprep.subr.mxu0 0.0
        %617 = vmatpush1.msra.mxu0 0.0
        %618 = vmatprep.subr.mxu0 0.0
        %619 = vmatpush1.msra.mxu0 0.0
        %620 = vmatprep.subr.mxu0 0.0
        %621 = vmatpush1.msra.mxu0 0.0
        %622 = vmatprep.mubr.f32.mxu0 0.0
        %623 = vmatmul.mubr.f32.gmra.mrb[0].mxu0 %v556
        %v624 = vpop.f32.mrb[0].mxu0
        %v625 = vadd.f32 0.0, %v624
        %v626 = vpop.f32.mrb[0].mxu0
        %627 = vdwg.mxu0
        %v628 = vadd.f32 %v552, %v625
        %629 = vst [vmem:[%s551] sm:$0xff] %v628
        // Predicated region
        $region61: #{tpu_custom_call.1} parent=39 // pred_check
          %p630 = pneg %p402
        $region62: #{tpu_custom_call.1} parent=39 // pred_check_branch
          %632 = sbr.rel (%p630) target = $region64
        $region63: #{tpu_custom_call.1} parent=39 // pred_region
          %v633 = vld [vmem:[%s387] sm:$0xff]
          %v634 = vld [vmem:[%s387 + $0x8] sm:$0xff]
          %v635 = vld [vmem:[%s399] sm:$0x1]
          %v636 = vld [vmem:[%s399 + $0x1] sm:$0x1]
          %v639 = vlaneseq
          %v640 = vshrl.u32 %v639, 7
          %v641 = vsub.s32 0, %v640
          %v642 = vrot.slane %v635, %v641
          %v643 = vlaneseq
          %v644 = vshrl.u32 %v643, 7
          %v645 = vsub.s32 0, %v644
          %v646 = vrot.slane %v636, %v645
          %v649 = vadd.f32 %v633, %v642
          %v650 = vadd.f32 %v634, %v646
          %651 = vst [vmem:[%s387] sm:$0xff] %v649
          %652 = vst [vmem:[%s387 + $0x8] sm:$0xff] %v650
        $region64: #{tpu_custom_call.1} parent=39 // pred_fallthru
          _
        %s653 = sand.u32 %s197, 1
        %s654 = scalar_lea.sflag [#allocation4], %s653
        %s655 = sand.u32 %s197, 1
        %s656 = smul.addr %s655, 16
        %s657 = scalar_lea.vmem [#allocation10], %s656
        // Predicated region
        $region65: #{tpu_custom_call.1} parent=39 // pred_check
          %p658 = pneg %p207
        $region66: #{tpu_custom_call.1} parent=39 // pred_check_branch
          %660 = sbr.rel (%p658) target = $region68
        $region67: #{tpu_custom_call.1} parent=39 // pred_region
          %s661 = smul.u32 2, %s32
          %s663 = ssub.s32 256, 256
          %664 = vsyncadd %s654, %s663
          %s665 = sadd.s32 %s31, %s661
          %s666 = smul.addr %s665, 128
          %s667 = scalar_lea.hbm %s5, %s666
          %s668 = sshll.u32 %s657, 4
          %s669 = int_to_ptr.vmem [resolvable:$true] %s668
          %674 = dma.vmem_to_hbm [thread:$0]  %s669, 256, %s667, %s654, 128, 128, 8
        $region68: #{tpu_custom_call.1} parent=39 // pred_fallthru
          _
      $region40: #{tpu_custom_call.1} parent=5 // pred_fallthru
        _
      %p675 = scmp.le.s32.totalorder 2, %s21
      // Predicated region
      $region69: #{tpu_custom_call.1} parent=5 // pred_check
        %p676 = pneg %p675
      $region70: #{tpu_custom_call.1} parent=5 // pred_check_branch
        %678 = sbr.rel (%p676) target = $region72
      $region71: #{tpu_custom_call.1} parent=5 // pred_region
        %s679 = ssub.s32 %s21, 2
        // Predicated region
        $region73: #{tpu_custom_call.1} parent=71 // pred_check
          %p680 = pneg %p213
        $region74: #{tpu_custom_call.1} parent=71 // pred_check_branch
          %682 = sbr.rel (%p680) target = $region76
        $region75: #{tpu_custom_call.1} parent=71 // pred_region
          %s683 = sand.u32 %s198, 1
          %s684 = scalar_lea.sflag [#allocation4], %s683
          %s685 = sand.u32 %s198, 1
          %s686 = smul.addr %s685, 16
          %s687 = scalar_lea.vmem [#allocation10], %s686
          %688 = dma.done %s684, 256
        $region76: #{tpu_custom_call.1} parent=71 // pred_fallthru
          _
      $region72: #{tpu_custom_call.1} parent=5 // pred_fallthru
        _
    $region6: #{tpu_custom_call.1} parent=1 // loop_footer
      %s25 = sadd.s32 1, %s21
    $region7: #{tpu_custom_call.1} parent=1 // loop_footer_branch
      %20 = sbr.rel target = $region3
    $region8: #{tpu_custom_call.1} parent=1 // loop_exit
      _
    %689 = vsyncpa [#allocation3], 1
    %s690 = scalar_lea.sflag [#allocation3], 1
    %691 = vsyncpa %s690, 1
    %692 = vsyncpa [#allocation6], 1
    %693 = vsyncpa [#allocation9], 1
    %s694 = scalar_lea.sflag [#allocation9], 1
    %695 = vsyncpa %s694, 1
    %696 = vsyncpa [#allocation4], 1
    %s697 = scalar_lea.sflag [#allocation4], 1
    %698 = vsyncpa %s697, 1

</llo_original>
